<compile_context>
chip_gen: v6e
topology: v6e:2x2x1
jax: 0.10.0
libtpu: 0.0.40
codegen_flags: <defaults>
</compile_context>

<pallas_src>
import functools

import jax
import jax.numpy as jnp
from jax import lax
from jax.experimental import pallas as pl
from jax.experimental.pallas import tpu as pltpu


def _round_up(a, m):
    return (a + m - 1) // m * m


def _vmem_capacity_bytes():
    """Best-effort physical VMEM size; conservative fallback (v7x-sized)."""
    try:
        info = pltpu.get_tpu_info()
        cap = getattr(info, "vmem_capacity_bytes", None)
        if cap:
            return int(cap)
    except Exception:
        pass
    return 64 * 1024 * 1024


def _choose_time_tile(T, C, kernel_size, halo_rows, in_bytes, out_bytes,
                      max_tile, vmem_budget, batch):
    """Largest time tile (multiple of halo_rows) whose working set fits VMEM."""
    # Per-output-row VMEM bytes (generous): 2x body (double buffered) +
    # 2x output (double buffered) + window copy + bf16 tap + two f32
    # accumulators + GLU temporaries.
    per_row = C * (2 * in_bytes + 2 * out_bytes + in_bytes + 2 + 2 * 4 + 2 * 4)
    fixed = (2 * 2 * kernel_size * C * C * 2      # double-buffered bf16 W_a, W_g
             + 2 * halo_rows * C * in_bytes       # double-buffered halo block
             + 2 * 2 * C * 4                      # bias
             + (1 << 20))                         # slack
    min_need = fixed + per_row * halo_rows
    if min_need > vmem_budget:
        raise ValueError(
            "ResidualBlock tile does not fit VMEM: "
            f"kernel_size={kernel_size}, C={C}, halo_rows={halo_rows} needs "
            f"~{min_need >> 20} MiB > budget {vmem_budget >> 20} MiB")
    cap = (vmem_budget - fixed) // per_row
    cap = max(halo_rows, cap // halo_rows * halo_rows)
    t_tile = min(max_tile, cap, _round_up(T, halo_rows))
    t_tile = max(halo_rows, t_tile // halo_rows * halo_rows)
    # v7x megacore: keep at least 2 grid steps when there is only one batch
    # element so both TensorCores get work (harmless on single-TC chips).
    if batch == 1 and T >= 2 * halo_rows:
        t_tile = min(t_tile, _round_up(-(-T // 2), halo_rows))
    return t_tile


def residual_block_kernel(body_ref, halo_ref, wa_ref, wg_ref, b_ref, o_ref, *,
                          kernel_size, dilation, pad, t_tile):
    """One grid step = one (batch, time-tile) block.

    body_ref : (1, t_tile, C)      x dtype, padded-time rows [t0, t0+t_tile)
    halo_ref : (1, halo_rows, C)   x dtype, padded-time rows [t0+t_tile, ...)
    wa_ref   : (k, C, C)           bf16 per-tap weights, GLU "a" half
    wg_ref   : (k, C, C)           bf16 per-tap weights, GLU "gate" half
    b_ref    : (2, C)              f32 bias (row 0 = a, row 1 = gate)
    o_ref    : (1, t_tile, C)      output
    """
    body = body_ref[0]                                   # (t_tile, C)
    if pad > 0:
        window = jnp.concatenate([body, halo_ref[0]], axis=0)
    else:
        window = body

    c = body.shape[-1]
    acc_a = jnp.zeros((t_tile, c), jnp.float32)
    acc_g = jnp.zeros((t_tile, c), jnp.float32)
    center = body

    # k accumulating MXU matmuls, one per tap; bf16 x bf16 -> f32 accumulate.
    for j in range(kernel_size):
        off = j * dilation
        tap = body if off == 0 else window[off:off + t_tile, :]
        if j == kernel_size // 2:
            center = tap                                  # exact f32 residual
        tap_b = tap.astype(jnp.bfloat16)
        acc_a = acc_a + jnp.dot(tap_b, wa_ref[j],
                                preferred_element_type=jnp.float32)
        acc_g = acc_g + jnp.dot(tap_b, wg_ref[j],
                                preferred_element_type=jnp.float32)

    acc_a = acc_a + b_ref[0:1, :]
    acc_g = acc_g + b_ref[1:2, :]

    glu = acc_a * jax.nn.sigmoid(acc_g)
    o_ref[0] = (center.astype(jnp.float32) + glu).astype(o_ref.dtype)


def residual_block(x, weight, bias, *, kernel_size, dilation,
                   time_tile=1024, out_dtype=None):
    """x: (B, T, C); weight: (2C, C, k) [PyTorch Conv1d OIH]; bias: (2C,)."""
    # Even kernel_size changes PyTorch's output-length/alignment semantics for
    # this padding choice; the module is used with odd kernels.
    assert kernel_size % 2 == 1, "residual_block expects odd kernel_size"
    B, T, C = x.shape
    assert weight.shape == (2 * C, C, kernel_size)
    assert bias.shape == (2 * C,)
    pad = (kernel_size // 2) * dilation
    out_dtype = x.dtype if out_dtype is None else out_dtype

    halo_rows = max(8, _round_up(2 * pad, 8))             # sublane-aligned halo
    vmem_budget = max(32 << 20, min(96 << 20, int(_vmem_capacity_bytes() * 3 // 4)))
    in_bytes = jnp.dtype(x.dtype).itemsize
    out_bytes = jnp.dtype(out_dtype).itemsize
    t_tile = _choose_time_tile(T, C, kernel_size, halo_rows, in_bytes,
                               out_bytes, time_tile, vmem_budget, B)
    n_t = -(-T // t_tile)
    t_full = n_t * t_tile
    length = t_full + halo_rows
    ratio = t_tile // halo_rows

    # Single time-padded view of x (original dtype, original channel count).
    # The conv window, halo and the *exact f32* residual all come from it.
    # TODO(synk): fold this time-pad into the kernel (clamped/masked halo
    # index_map) to remove the remaining extra HBM pass.
    xpad = jnp.pad(x, ((0, 0), (pad, length - pad - T), (0, 0)))

    # Per-tap weights, split into GLU halves: (k, C_in, C_out) bf16 for the MXU.
    w_a = jnp.transpose(weight[:C], (2, 1, 0)).astype(jnp.bfloat16)
    w_g = jnp.transpose(weight[C:], (2, 1, 0)).astype(jnp.bfloat16)
    b2 = jnp.stack([bias[:C], bias[C:]]).astype(jnp.float32)   # (2, C)

    kern = functools.partial(residual_block_kernel, kernel_size=kernel_size,
                             dilation=dilation, pad=pad, t_tile=t_tile)

    out = pl.pallas_call(
        kern,
        out_shape=jax.ShapeDtypeStruct((B, t_full, C), out_dtype),
        grid_spec=pltpu.PrefetchScalarGridSpec(
            num_scalar_prefetch=0,
            grid=(B, n_t),
            in_specs=[
                # Main body of the padded input for this tile.
                pl.BlockSpec((1, t_tile, C), lambda b, t: (b, t, 0)),
                # Trailing halo rows (element offset (t+1)*t_tile).
                pl.BlockSpec((1, halo_rows, C),
                             lambda b, t: (b, (t + 1) * ratio, 0)),
                # Per-tap weights / bias: same block for every grid step.
                pl.BlockSpec((kernel_size, C, C), lambda b, t: (0, 0, 0)),
                pl.BlockSpec((kernel_size, C, C), lambda b, t: (0, 0, 0)),
                pl.BlockSpec((2, C), lambda b, t: (0, 0)),
            ],
            out_specs=pl.BlockSpec((1, t_tile, C), lambda b, t: (b, t, 0)),
        ),
        compiler_params=pltpu.CompilerParams(
            dimension_semantics=("parallel", "parallel"),
            vmem_limit_bytes=int(vmem_budget)),
    )(xpad, xpad, w_a, w_g, b2)

    return out if t_full == T else out[:, :T, :]


def residual_block_ref(x, weight, bias, *, kernel_size, dilation):
    """Pure-JAX f32 reference matching the PyTorch forward."""
    pad = (kernel_size // 2) * dilation
    x_nct = jnp.transpose(x, (0, 2, 1))  # (B, C, T)
    out = lax.conv_general_dilated(
        x_nct, weight,
        window_strides=(1,),
        padding=[(pad, pad)],
        rhs_dilation=(dilation,),
        dimension_numbers=("NCH", "OIH", "NCH"),
        precision=lax.Precision.HIGHEST,
    ) + bias[None, :, None]
    out = jnp.transpose(out, (0, 2, 1))  # (B, T, 2C)
    C = x.shape[2]
    a, g = out[..., :C], out[..., C:]
    return x + a * jax.nn.sigmoid(g)


if __name__ == "__main__":
    B, T, C = 2, 16, 32
    kernel_size, dilation = 3, 2

    key = jax.random.PRNGKey(0)
    kx, kw, kb = jax.random.split(key, 3)

    x = jax.random.normal(kx, (B, T, C), dtype=jnp.float32)

    # Deterministic parameter init mirroring the module's __init__ shapes:
    # Conv1d(in=C, out=2C, k) -> weight (2C, C, k); xavier_normal (activation=False).
    fan_in = C * kernel_size
    fan_out = 2 * C * kernel_size
    xavier_std = (2.0 / (fan_in + fan_out)) ** 0.5
    weight = xavier_std * jax.random.normal(kw, (2 * C, C, kernel_size),
                                            dtype=jnp.float32)
    bias_bound = 1.0 / (fan_in ** 0.5)
    bias = jax.random.uniform(kb, (2 * C,), dtype=jnp.float32,
                              minval=-bias_bound, maxval=bias_bound)

    out = residual_block(x, weight, bias,
                         kernel_size=kernel_size, dilation=dilation)
    out = jax.block_until_ready(out)
    assert out.shape == (B, T, C)

    # Honest comparison against the full-f32 reference: the residual is exact
    # f32 in the kernel; the only deviation is bf16 rounding of the conv
    # operands on the MXU (f32 accumulation), covered by the tolerance below.
    ref = residual_block_ref(x, weight, bias,
                             kernel_size=kernel_size, dilation=dilation)
    assert jnp.allclose(out, ref, atol=3e-2, rtol=3e-2), "mismatch vs reference"

    print("KERNEL_OK")
</pallas_src>

<mosaic_0001>
module attributes {stable_mosaic.version = 11 : i64} {
  func.func @residual_block_kernel(%arg0: i32, %arg1: i32, %arg2: memref<1x16x32xf32, #tpu.memory_space<vmem>>, %arg3: memref<1x8x32xf32, #tpu.memory_space<vmem>>, %arg4: memref<3x32x32xbf16, #tpu.memory_space<vmem>>, %arg5: memref<3x32x32xbf16, #tpu.memory_space<vmem>>, %arg6: memref<2x32xf32, #tpu.memory_space<vmem>>, %arg7: memref<1x16x32xf32, #tpu.memory_space<vmem>>) attributes {dimension_semantics = [#tpu.dimension_semantics<parallel>, #tpu.dimension_semantics<parallel>], iteration_bounds = array<i64: 2, 1>, scalar_prefetch = 0 : i64, scratch_operands = 0 : i64, tpu.core_type = #tpu.core_type<tc>, window_params = [{transform_indices = @transform_0, window_bounds = array<i64: 1, 16, 32>}, {transform_indices = @transform_1, window_bounds = array<i64: 1, 8, 32>}, {pipeline_mode = #tpu.pipeline_mode<synchronous>, transform_indices = @transform_2, window_bounds = array<i64: 3, 32, 32>}, {pipeline_mode = #tpu.pipeline_mode<synchronous>, transform_indices = @transform_3, window_bounds = array<i64: 3, 32, 32>}, {pipeline_mode = #tpu.pipeline_mode<synchronous>, transform_indices = @transform_4, window_bounds = array<i64: 2, 32>}, {transform_indices = @transform_5, window_bounds = array<i64: 1, 16, 32>}]} {
    %c0 = arith.constant 0 : index
    %c0_0 = arith.constant 0 : index
    %c0_1 = arith.constant 0 : index
    %0 = vector.load %arg2[%c0, %c0_0, %c0_1] : memref<1x16x32xf32, #tpu.memory_space<vmem>>, vector<1x16x32xf32>
    %1 = vector.shape_cast %0 : vector<1x16x32xf32> to vector<16x32xf32>
    %c0_2 = arith.constant 0 : index
    %c0_3 = arith.constant 0 : index
    %c0_4 = arith.constant 0 : index
    %2 = vector.load %arg3[%c0_2, %c0_3, %c0_4] : memref<1x8x32xf32, #tpu.memory_space<vmem>>, vector<1x8x32xf32>
    %3 = vector.shape_cast %2 : vector<1x8x32xf32> to vector<8x32xf32>
    %4 = tpu.concatenate %1, %3 in 0 : vector<16x32xf32>, vector<8x32xf32> -> vector<24x32xf32>
    %cst = arith.constant 0.000000e+00 : f32
    %5 = vector.broadcast %cst : f32 to vector<16x32xf32>
    %cst_5 = arith.constant 0.000000e+00 : f32
    %6 = vector.broadcast %cst_5 : f32 to vector<16x32xf32>
    %7 = arith.truncf %1 : vector<16x32xf32> to vector<16x32xbf16>
    %c0_6 = arith.constant 0 : index
    %c0_7 = arith.constant 0 : index
    %c0_8 = arith.constant 0 : index
    %8 = vector.load %arg4[%c0_6, %c0_7, %c0_8] : memref<3x32x32xbf16, #tpu.memory_space<vmem>>, vector<1x32x32xbf16>
    %9 = vector.shape_cast %8 : vector<1x32x32xbf16> to vector<32x32xbf16>
    %cst_9 = arith.constant dense<0.000000e+00> : vector<16x32xf32>
    %10 = tpu.matmul %7, %9, %cst_9 {dimension_numbers = #tpu.dot_dimension_numbers<[1], [0], [0], [1], [0, 0, 1, 1], [], []>} : vector<16x32xbf16>, vector<32x32xbf16>, vector<16x32xf32> -> vector<16x32xf32>
    %11 = arith.addf %5, %10 : vector<16x32xf32>
    %c0_10 = arith.constant 0 : index
    %c0_11 = arith.constant 0 : index
    %c0_12 = arith.constant 0 : index
    %12 = vector.load %arg5[%c0_10, %c0_11, %c0_12] : memref<3x32x32xbf16, #tpu.memory_space<vmem>>, vector<1x32x32xbf16>
    %13 = vector.shape_cast %12 : vector<1x32x32xbf16> to vector<32x32xbf16>
    %cst_13 = arith.constant dense<0.000000e+00> : vector<16x32xf32>
    %14 = tpu.matmul %7, %13, %cst_13 {dimension_numbers = #tpu.dot_dimension_numbers<[1], [0], [0], [1], [0, 0, 1, 1], [], []>} : vector<16x32xbf16>, vector<32x32xbf16>, vector<16x32xf32> -> vector<16x32xf32>
    %15 = arith.addf %6, %14 : vector<16x32xf32>
    %16 = vector.extract_strided_slice %4 {offsets = [2, 0], sizes = [16, 32], strides = [1, 1]} : vector<24x32xf32> to vector<16x32xf32>
    %17 = arith.truncf %16 : vector<16x32xf32> to vector<16x32xbf16>
    %c1 = arith.constant 1 : index
    %c0_14 = arith.constant 0 : index
    %c0_15 = arith.constant 0 : index
    %18 = vector.load %arg4[%c1, %c0_14, %c0_15] : memref<3x32x32xbf16, #tpu.memory_space<vmem>>, vector<1x32x32xbf16>
    %19 = vector.shape_cast %18 : vector<1x32x32xbf16> to vector<32x32xbf16>
    %cst_16 = arith.constant dense<0.000000e+00> : vector<16x32xf32>
    %20 = tpu.matmul %17, %19, %cst_16 {dimension_numbers = #tpu.dot_dimension_numbers<[1], [0], [0], [1], [0, 0, 1, 1], [], []>} : vector<16x32xbf16>, vector<32x32xbf16>, vector<16x32xf32> -> vector<16x32xf32>
    %21 = arith.addf %11, %20 : vector<16x32xf32>
    %c1_17 = arith.constant 1 : index
    %c0_18 = arith.constant 0 : index
    %c0_19 = arith.constant 0 : index
    %22 = vector.load %arg5[%c1_17, %c0_18, %c0_19] : memref<3x32x32xbf16, #tpu.memory_space<vmem>>, vector<1x32x32xbf16>
    %23 = vector.shape_cast %22 : vector<1x32x32xbf16> to vector<32x32xbf16>
    %cst_20 = arith.constant dense<0.000000e+00> : vector<16x32xf32>
    %24 = tpu.matmul %17, %23, %cst_20 {dimension_numbers = #tpu.dot_dimension_numbers<[1], [0], [0], [1], [0, 0, 1, 1], [], []>} : vector<16x32xbf16>, vector<32x32xbf16>, vector<16x32xf32> -> vector<16x32xf32>
    %25 = arith.addf %15, %24 : vector<16x32xf32>
    %26 = vector.extract_strided_slice %4 {offsets = [4, 0], sizes = [16, 32], strides = [1, 1]} : vector<24x32xf32> to vector<16x32xf32>
    %27 = arith.truncf %26 : vector<16x32xf32> to vector<16x32xbf16>
    %c2 = arith.constant 2 : index
    %c0_21 = arith.constant 0 : index
    %c0_22 = arith.constant 0 : index
    %28 = vector.load %arg4[%c2, %c0_21, %c0_22] : memref<3x32x32xbf16, #tpu.memory_space<vmem>>, vector<1x32x32xbf16>
    %29 = vector.shape_cast %28 : vector<1x32x32xbf16> to vector<32x32xbf16>
    %cst_23 = arith.constant dense<0.000000e+00> : vector<16x32xf32>
    %30 = tpu.matmul %27, %29, %cst_23 {dimension_numbers = #tpu.dot_dimension_numbers<[1], [0], [0], [1], [0, 0, 1, 1], [], []>} : vector<16x32xbf16>, vector<32x32xbf16>, vector<16x32xf32> -> vector<16x32xf32>
    %31 = arith.addf %21, %30 : vector<16x32xf32>
    %c2_24 = arith.constant 2 : index
    %c0_25 = arith.constant 0 : index
    %c0_26 = arith.constant 0 : index
    %32 = vector.load %arg5[%c2_24, %c0_25, %c0_26] : memref<3x32x32xbf16, #tpu.memory_space<vmem>>, vector<1x32x32xbf16>
    %33 = vector.shape_cast %32 : vector<1x32x32xbf16> to vector<32x32xbf16>
    %cst_27 = arith.constant dense<0.000000e+00> : vector<16x32xf32>
    %34 = tpu.matmul %27, %33, %cst_27 {dimension_numbers = #tpu.dot_dimension_numbers<[1], [0], [0], [1], [0, 0, 1, 1], [], []>} : vector<16x32xbf16>, vector<32x32xbf16>, vector<16x32xf32> -> vector<16x32xf32>
    %35 = arith.addf %25, %34 : vector<16x32xf32>
    %c0_28 = arith.constant 0 : index
    %c0_29 = arith.constant 0 : index
    %36 = vector.load %arg6[%c0_28, %c0_29] : memref<2x32xf32, #tpu.memory_space<vmem>>, vector<1x32xf32>
    %37 = vector.broadcast %36 : vector<1x32xf32> to vector<16x32xf32>
    %38 = arith.addf %31, %37 : vector<16x32xf32>
    %c1_30 = arith.constant 1 : index
    %c0_31 = arith.constant 0 : index
    %39 = vector.load %arg6[%c1_30, %c0_31] : memref<2x32xf32, #tpu.memory_space<vmem>>, vector<1x32xf32>
    %40 = vector.broadcast %39 : vector<1x32xf32> to vector<16x32xf32>
    %41 = arith.addf %35, %40 : vector<16x32xf32>
    %42 = arith.negf %41 : vector<16x32xf32>
    %43 = math.exp %42 : vector<16x32xf32>
    %cst_32 = arith.constant 1.000000e+00 : f32
    %44 = vector.broadcast %cst_32 : f32 to vector<16x32xf32>
    %45 = arith.addf %44, %43 : vector<16x32xf32>
    %46 = arith.divf %44, %45 : vector<16x32xf32>
    %47 = arith.mulf %38, %46 : vector<16x32xf32>
    %48 = arith.addf %16, %47 : vector<16x32xf32>
    %c0_33 = arith.constant 0 : index
    %c0_34 = arith.constant 0 : index
    %c0_35 = arith.constant 0 : index
    %49 = vector.load %arg7[%c0_33, %c0_34, %c0_35] : memref<1x16x32xf32, #tpu.memory_space<vmem>>, vector<1x16x32xf32>
    %50 = vector.shape_cast %49 : vector<1x16x32xf32> to vector<16x32xf32>
    %51 = vector.shape_cast %48 : vector<16x32xf32> to vector<1x16x32xf32>
    tpu.vector_store %arg7[%c0_33, %c0_34, %c0_35], %51 {strides = array<i32>} : memref<1x16x32xf32, #tpu.memory_space<vmem>>, vector<1x16x32xf32>,
    return
  }
  func.func @transform_0(%arg0: i32, %arg1: i32) -> (i32, i32, i32) {
    %c0_i32 = arith.constant 0 : i32
    %c0_i32_0 = arith.constant 0 : i32
    return %arg0, %arg1, %c0_i32 : i32, i32, i32
  }
  func.func @transform_1(%arg0: i32, %arg1: i32) -> (i32, i32, i32) {
    %c1_i32 = arith.constant 1 : i32
    %0 = arith.addi %arg1, %c1_i32 : i32
    %c2_i32 = arith.constant 2 : i32
    %1 = arith.muli %0, %c2_i32 : i32
    %c0_i32 = arith.constant 0 : i32
    %c0_i32_0 = arith.constant 0 : i32
    return %arg0, %1, %c0_i32 : i32, i32, i32
  }
  func.func @transform_2(%arg0: i32, %arg1: i32) -> (i32, i32, i32) {
    %c0_i32 = arith.constant 0 : i32
    %c0_i32_0 = arith.constant 0 : i32
    %c0_i32_1 = arith.constant 0 : i32
    %c0_i32_2 = arith.constant 0 : i32
    return %c0_i32, %c0_i32_0, %c0_i32_1 : i32, i32, i32
  }
  func.func @transform_3(%arg0: i32, %arg1: i32) -> (i32, i32, i32) {
    %c0_i32 = arith.constant 0 : i32
    %c0_i32_0 = arith.constant 0 : i32
    %c0_i32_1 = arith.constant 0 : i32
    %c0_i32_2 = arith.constant 0 : i32
    return %c0_i32, %c0_i32_0, %c0_i32_1 : i32, i32, i32
  }
  func.func @transform_4(%arg0: i32, %arg1: i32) -> (i32, i32) {
    %c0_i32 = arith.constant 0 : i32
    %c0_i32_0 = arith.constant 0 : i32
    %c0_i32_1 = arith.constant 0 : i32
    return %c0_i32, %c0_i32_0 : i32, i32
  }
  func.func @transform_5(%arg0: i32, %arg1: i32) -> (i32, i32, i32) {
    %c0_i32 = arith.constant 0 : i32
    %c0_i32_0 = arith.constant 0 : i32
    return %arg0, %arg1, %c0_i32 : i32, i32, i32
  }
}

</mosaic_0001>

<llo_original>
// kernel: tpu_custom_call.1
$region0: #{tpu_custom_call.1}
  #allocation0 [shape = 'u32[]', space=smem, size = 0x4, offset = 0x4, fixed_abs, tag = 'smem constant byte address 0x4 - core index']
  #allocation1 [shape = 'u32[144,128]{1,0:T(1,128)}', space=vmem, size = 0x12000, scoped, tag = 'internal scratch']
  %s0 = inlined_call_operand.hbm [shape: f32[2,24,32], index: 0, kind: input, shape index: {}]
  %s1 = inlined_call_operand.hbm [shape: f32[2,24,32], index: 1, kind: input, shape index: {}]
  %s2 = inlined_call_operand.hbm [shape: bf16[3,32,32], index: 2, kind: input, shape index: {}]
  %s3 = inlined_call_operand.hbm [shape: bf16[3,32,32], index: 3, kind: input, shape index: {}]
  %s4 = inlined_call_operand.vmem [shape: f32[2,32], index: 4, kind: input, shape index: {}]
  %s5 = inlined_call_operand.hbm [shape: f32[2,16,32], index: 5, kind: output, shape index: {}]
  %s6 = sld [smem:[#allocation0]]
  $region69: #{tpu_custom_call.1} parent=0
    _
  %s8 = ssub.s32 1, %s6
  %s9 = scalar_select 0, %s8, %s6
  $region1: #{tpu_custom_call.1} parent=0
    #allocation2 [shape = 'u8[16384]{0}', space=vmem, size = 0x4000, scoped, tag = 'input window, operand 0']
    #allocation3 [shape = 's32[2]{0}', space=sflag, size = 0x8, scoped, tag = 'scoped memory for tpu_custom_call.1']
    #allocation4 [shape = 's32[2]{0}', space=sflag, size = 0x8, scoped, tag = 'scoped memory for tpu_custom_call.1']
    #allocation5 [shape = 'u8[8192]{0}', space=vmem, size = 0x2000, scoped, tag = 'input window, operand 1']
    #allocation6 [shape = 's32[2]{0}', space=sflag, size = 0x8, scoped, tag = 'scoped memory for tpu_custom_call.1']
    #allocation7 [shape = 'u8[24576]{0}', space=vmem, size = 0x6000, scoped, tag = 'input window, operand 2, single buffered']
    #allocation8 [shape = 'u8[24576]{0}', space=vmem, size = 0x6000, scoped, tag = 'input window, operand 3, single buffered']
    #allocation9 [shape = 's32[1]{0}', space=sflag, size = 0x4, scoped, tag = 'scoped memory for tpu_custom_call.1']
    #allocation10 [shape = 'u8[16384]{0}', space=vmem, size = 0x4000, scoped, tag = 'output window, operand 0']
    %10 = vsyncpa [#allocation3], 0
    %s11 = scalar_lea.sflag [#allocation3], 1
    %12 = vsyncpa %s11, 0
    %13 = vsyncpa [#allocation6], 0
    %s14 = scalar_lea.sflag [#allocation6], 1
    %15 = vsyncpa %s14, 0
    %16 = vsyncpa [#allocation9], 0
    %17 = vsyncpa [#allocation4], 0
    %s18 = scalar_lea.sflag [#allocation4], 1
    %19 = vsyncpa %s18, 0
    loop: start=0, step=1, limit=4
    $region2: #{tpu_custom_call.1} parent=1 // loop_pre_header
      _
    $region3: #{tpu_custom_call.1} parent=1 // loop_header
      %s21 = sphi 0, %s25
      %p22 = scmp.ge.s32.totalorder %s21, 4
      %s28 = sphi 0, %s40
      %s29 = sphi 0, %s36
      %s30 = sphi 0, %s28
      %s31 = sphi 0, %s29
      %s32 = sphi 0, %s30
      %s33 = sphi 0, %s31
      %s45 = sphi 0, %s47
      %s48 = sphi 0, %s45
      %s49 = sphi 0, %s48
      %s65 = sphi 0, %s49
      %s77 = sphi 0, %s79
      %s80 = sphi 0, %s77
      %s81 = sphi 0, %s80
      %s97 = sphi 0, %s81
      %s101 = sphi 0, %s101
      %s103 = sphi 0, %s101
      %s104 = sphi 0, %s103
      %s118 = sphi 0, %s104
      %s122 = sphi 0, %s122
      %s124 = sphi 0, %s122
      %s125 = sphi 0, %s124
      %s139 = sphi 0, %s125
      %s143 = sphi 0, %s143
      %s145 = sphi 0, %s143
      %s146 = sphi 0, %s145
      %s160 = sphi 0, %s146
      %s168 = sphi 0, %s170
      %s171 = sphi 0, %s168
      %s172 = sphi 0, %s171
      %s188 = sphi 0, %s172
    $region4: #{tpu_custom_call.1} parent=1 // loop_header_branch
      %24 = sbr.rel (%p22) target = $region8
    $region5: #{tpu_custom_call.1} parent=1 // loop_body
      %s26 = ssub.s32 %s21, 1
      %s27 = ssub.s32 %s21, 2
      %s34 = sadd.s32 1, %s29
      %p35 = scmp.ge.s32.totalorder %s34, 1
      %s36 = scalar_select %p35, 0, %s34
      %s37 = sadd.s32 1, %s28
      %s38 = scalar_select %p35, %s37, %s28
      %p39 = scmp.ge.s32.totalorder %s38, 2
      %s40 = scalar_select %p39, 0, %s38
      %s41 = ssub.s32 %s28, %s40
      %s42 = ssub.s32 %s29, %s36
      %s43 = sor.u32 %s41, %s42
      %p44 = scmp.eq.s32.totalorder %s43, 0
      %s46 = sadd.s32 %s45, 1
      %s47 = scalar_select %p44, %s45, %s46
      %p50 = pneg %p44
      %p51 = scmp.eq.s32.totalorder %s21, 1
      %p52 = por %p50, %p51
      %p53 = scmp.ne.s32.totalorder %s45, %s48
      %p54 = scmp.eq.s32.totalorder %s21, 0
      %p55 = por %p53, %p54
      %p56 = scmp.ne.s32.totalorder %s45, %s48
      %p57 = scmp.eq.s32.totalorder %s26, 1
      %p58 = por %p56, %p57
      %p59 = scmp.ne.s32.totalorder %s48, %s49
      %p60 = scmp.eq.s32.totalorder %s26, 0
      %p61 = por %p59, %p60
      %p62 = scmp.ne.s32.totalorder %s48, %s49
      %p63 = scmp.eq.s32.totalorder %s27, 1
      %p64 = por %p62, %p63
      %p66 = scmp.ne.s32.totalorder %s49, %s65
      %p67 = scmp.eq.s32.totalorder %s27, 0
      %p68 = por %p66, %p67
      %s69 = sadd.s32 %s29, 1
      %s70 = smul.u32 %s69, 2
      %s71 = sadd.s32 %s36, 1
      %s72 = smul.u32 %s71, 2
      %s73 = ssub.s32 %s28, %s40
      %s74 = ssub.s32 %s70, %s72
      %s75 = sor.u32 %s73, %s74
      %p76 = scmp.eq.s32.totalorder %s75, 0
      %s78 = sadd.s32 %s77, 1
      %s79 = scalar_select %p76, %s77, %s78
      %p82 = pneg %p76
      %p83 = scmp.eq.s32.totalorder %s21, 1
      %p84 = por %p82, %p83
      %p85 = scmp.ne.s32.totalorder %s77, %s80
      %p86 = scmp.eq.s32.totalorder %s21, 0
      %p87 = por %p85, %p86
      %p88 = scmp.ne.s32.totalorder %s77, %s80
      %p89 = scmp.eq.s32.totalorder %s26, 1
      %p90 = por %p88, %p89
      %p91 = scmp.ne.s32.totalorder %s80, %s81
      %p92 = scmp.eq.s32.totalorder %s26, 0
      %p93 = por %p91, %p92
      %p94 = scmp.ne.s32.totalorder %s80, %s81
      %p95 = scmp.eq.s32.totalorder %s27, 1
      %p96 = por %p94, %p95
      %p98 = scmp.ne.s32.totalorder %s81, %s97
      %p99 = scmp.eq.s32.totalorder %s27, 0
      %p100 = por %p98, %p99
      %s102 = sadd.s32 %s101, 1
      %p105 = scmp.eq.s32.totalorder %s21, 1
      %p106 = scmp.ne.s32.totalorder %s101, %s103
      %p107 = scmp.eq.s32.totalorder %s21, 0
      %p108 = por %p106, %p107
      %p109 = scmp.ne.s32.totalorder %s101, %s103
      %p110 = scmp.eq.s32.totalorder %s26, 1
      %p111 = por %p109, %p110
      %p112 = scmp.ne.s32.totalorder %s103, %s104
      %p113 = scmp.eq.s32.totalorder %s26, 0
      %p114 = por %p112, %p113
      %p115 = scmp.ne.s32.totalorder %s103, %s104
      %p116 = scmp.eq.s32.totalorder %s27, 1
      %p117 = por %p115, %p116
      %p119 = scmp.ne.s32.totalorder %s104, %s118
      %p120 = scmp.eq.s32.totalorder %s27, 0
      %p121 = por %p119, %p120
      %s123 = sadd.s32 %s122, 1
      %p126 = scmp.eq.s32.totalorder %s21, 1
      %p127 = scmp.ne.s32.totalorder %s122, %s124
      %p128 = scmp.eq.s32.totalorder %s21, 0
      %p129 = por %p127, %p128
      %p130 = scmp.ne.s32.totalorder %s122, %s124
      %p131 = scmp.eq.s32.totalorder %s26, 1
      %p132 = por %p130, %p131
      %p133 = scmp.ne.s32.totalorder %s124, %s125
      %p134 = scmp.eq.s32.totalorder %s26, 0
      %p135 = por %p133, %p134
      %p136 = scmp.ne.s32.totalorder %s124, %s125
      %p137 = scmp.eq.s32.totalorder %s27, 1
      %p138 = por %p136, %p137
      %p140 = scmp.ne.s32.totalorder %s125, %s139
      %p141 = scmp.eq.s32.totalorder %s27, 0
      %p142 = por %p140, %p141
      %s144 = sadd.s32 %s143, 1
      %p147 = scmp.eq.s32.totalorder %s21, 1
      %p148 = scmp.ne.s32.totalorder %s143, %s145
      %p149 = scmp.eq.s32.totalorder %s21, 0
      %p150 = por %p148, %p149
      %p151 = scmp.ne.s32.totalorder %s143, %s145
      %p152 = scmp.eq.s32.totalorder %s26, 1
      %p153 = por %p151, %p152
      %p154 = scmp.ne.s32.totalorder %s145, %s146
      %p155 = scmp.eq.s32.totalorder %s26, 0
      %p156 = por %p154, %p155
      %p157 = scmp.ne.s32.totalorder %s145, %s146
      %p158 = scmp.eq.s32.totalorder %s27, 1
      %p159 = por %p157, %p158
      %p161 = scmp.ne.s32.totalorder %s146, %s160
      %p162 = scmp.eq.s32.totalorder %s27, 0
      %p163 = por %p161, %p162
      %s164 = ssub.s32 %s28, %s40
      %s165 = ssub.s32 %s29, %s36
      %s166 = sor.u32 %s164, %s165
      %p167 = scmp.eq.s32.totalorder %s166, 0
      %s169 = sadd.s32 %s168, 1
      %s170 = scalar_select %p167, %s168, %s169
      %p173 = pneg %p167
      %p174 = scmp.eq.s32.totalorder %s21, 1
      %p175 = por %p173, %p174
      %p176 = scmp.ne.s32.totalorder %s168, %s171
      %p177 = scmp.eq.s32.totalorder %s21, 0
      %p178 = por %p176, %p177
      %p179 = scmp.ne.s32.totalorder %s168, %s171
      %p180 = scmp.eq.s32.totalorder %s26, 1
      %p181 = por %p179, %p180
      %p182 = scmp.ne.s32.totalorder %s171, %s172
      %p183 = scmp.eq.s32.totalorder %s26, 0
      %p184 = por %p182, %p183
      %p185 = scmp.ne.s32.totalorder %s171, %s172
      %p186 = scmp.eq.s32.totalorder %s27, 1
      %p187 = por %p185, %p186
      %p189 = scmp.ne.s32.totalorder %s172, %s188
      %p190 = scmp.eq.s32.totalorder %s27, 0
      %p191 = por %p189, %p190
      %p192 = scmp.le.s32.totalorder 1, %s21
      %p193 = scmp.lt.s32.totalorder %s21, 3
      %p194 = pnand %p192, %p193
      %p195 = pneg %p194
      // Predicated region
      $region9: #{tpu_custom_call.1} parent=5 // pred_check
        _
      $region10: #{tpu_custom_call.1} parent=5 // pred_check_branch
        %197 = sbr.rel (%p194) target = $region12
      $region11: #{tpu_custom_call.1} parent=5 // pred_region
        %s198 = ssub.s32 %s21, 1
        // Predicated region
        $region13: #{tpu_custom_call.1} parent=11 // pred_check
          %p199 = pneg %p114
        $region14: #{tpu_custom_call.1} parent=11 // pred_check_branch
          %201 = sbr.rel (%p199) target = $region16
        $region15: #{tpu_custom_call.1} parent=11 // pred_region
          %s203 = ssub.s32 768, 768
          %204 = vsyncadd [#allocation6], %s203
          %s205 = sshll.u32 [#allocation7], 4
          %s206 = int_to_ptr.vmem [resolvable:$true] %s205
          %211 = dma.hbm_to_vmem [thread:$0]  %s2, 768, %s206, [#allocation6], 64, 64, 4
        $region16: #{tpu_custom_call.1} parent=11 // pred_fallthru
          _
        // Predicated region
        $region17: #{tpu_custom_call.1} parent=11 // pred_check
          %p212 = pneg %p135
        $region18: #{tpu_custom_call.1} parent=11 // pred_check_branch
          %214 = sbr.rel (%p212) target = $region20
        $region19: #{tpu_custom_call.1} parent=11 // pred_region
          %s216 = ssub.s32 768, 768
          %217 = vsyncadd [#allocation9], %s216
          %s218 = sshll.u32 [#allocation8], 4
          %s219 = int_to_ptr.vmem [resolvable:$true] %s218
          %224 = dma.hbm_to_vmem [thread:$0]  %s3, 768, %s219, [#allocation9], 64, 64, 4
        $region20: #{tpu_custom_call.1} parent=11 // pred_fallthru
          _
        // Predicated region
        $region21: #{tpu_custom_call.1} parent=11 // pred_check
          %p225 = pneg %p156
        $region22: #{tpu_custom_call.1} parent=11 // pred_check_branch
          %227 = sbr.rel (%p225) target = $region24
        $region23: #{tpu_custom_call.1} parent=11 // pred_region
          _
        $region24: #{tpu_custom_call.1} parent=11 // pred_fallthru
          _
      $region12: #{tpu_custom_call.1} parent=5 // pred_fallthru
        _
      %p228 = scmp.lt.s32.totalorder %s21, 2
      // Predicated region
      $region25: #{tpu_custom_call.1} parent=5 // pred_check
        %p229 = pneg %p228
      $region26: #{tpu_custom_call.1} parent=5 // pred_check_branch
        %231 = sbr.rel (%p229) target = $region28
      $region27: #{tpu_custom_call.1} parent=5 // pred_region
        // Predicated region
        $region29: #{tpu_custom_call.1} parent=27 // pred_check
          %p232 = pneg %p55
        $region30: #{tpu_custom_call.1} parent=27 // pred_check_branch
          %234 = sbr.rel (%p232) target = $region32
        $region31: #{tpu_custom_call.1} parent=27 // pred_region
          %s235 = sand.u32 %s45, 1
          %s236 = scalar_lea.sflag [#allocation3], %s235
          %s237 = sand.u32 %s45, 1
          %s238 = smul.addr %s237, 16
          %s239 = scalar_lea.vmem [#allocation2], %s238
          %s240 = smul.u32 2, %s29
          %s241 = ssub.s32 3, %s240
          %p242 = scmp.lt.s32.totalorder %s241, 2
          %s243 = scalar_select %p242, %s241, 2
          %s244 = smul.u32 128, %s243
          %s246 = ssub.s32 256, %s244
          %247 = vsyncadd %s236, %s246
          %p248 = scmp.ne.s32.totalorder 0, %s244
          %s249 = smul.addr %s28, 3
          %s250 = sadd.s32 %s240, %s249
          %s251 = smul.addr %s250, 128
          %s252 = scalar_lea.hbm %s0, %s251
          %s253 = smul.u32 8, %s243
          %s254 = sshll.u32 %s239, 4
          %s255 = int_to_ptr.vmem [resolvable:$true] %s254
          %s256 = sshll.u32 %s253, 4
          %260 = dma.hbm_to_vmem [thread:$0]  (%p248), %s252, %s256, %s255, %s236, 128, 128, 8
        $region32: #{tpu_custom_call.1} parent=27 // pred_fallthru
          _
        // Predicated region
        $region33: #{tpu_custom_call.1} parent=27 // pred_check
          %p261 = pneg %p87
        $region34: #{tpu_custom_call.1} parent=27 // pred_check_branch
          %263 = sbr.rel (%p261) target = $region36
        $region35: #{tpu_custom_call.1} parent=27 // pred_region
          %s264 = sand.u32 %s21, 1
          %s265 = scalar_lea.sflag [#allocation6], %s264
          %s266 = sand.u32 %s77, 1
          %s267 = smul.addr %s266, 8
          %s268 = scalar_lea.vmem [#allocation5], %s267
          %s269 = sadd.s32 %s29, 1
          %s270 = smul.u32 %s269, 2
          %s272 = ssub.s32 128, 128
          %273 = vsyncadd %s265, %s272
          %s274 = smul.addr %s28, 3
          %s275 = sadd.s32 %s270, %s274
          %s276 = smul.addr %s275, 128
          %s277 = scalar_lea.hbm %s1, %s276
          %s279 = sshll.u32 %s268, 4
          %s280 = int_to_ptr.vmem [resolvable:$true] %s279
          %282 = dma.hbm_to_vmem [thread:$0]  %s277, 128, %s280, %s265
        $region36: #{tpu_custom_call.1} parent=27 // pred_fallthru
          _
      $region28: #{tpu_custom_call.1} parent=5 // pred_fallthru
        _
      %p283 = scmp.le.s32.totalorder 1, %s21
      %p284 = scmp.lt.s32.totalorder %s21, 3
      %p285 = pnand %p283, %p284
      %p286 = pneg %p285
      // Predicated region
      $region37: #{tpu_custom_call.1} parent=5 // pred_check
        _
      $region38: #{tpu_custom_call.1} parent=5 // pred_check_branch
        %288 = sbr.rel (%p285) target = $region40
      $region39: #{tpu_custom_call.1} parent=5 // pred_region
        %s289 = ssub.s32 %s21, 1
        %s290 = sand.u32 %s48, 1
        %s291 = scalar_lea.sflag [#allocation3], %s290
        %s292 = sand.u32 %s48, 1
        %s293 = smul.addr %s292, 16
        %s294 = scalar_lea.vmem [#allocation2], %s293
        // Predicated region
        $region41: #{tpu_custom_call.1} parent=39 // pred_check
          %p295 = pneg %p61
        $region42: #{tpu_custom_call.1} parent=39 // pred_check_branch
          %297 = sbr.rel (%p295) target = $region44
        $region43: #{tpu_custom_call.1} parent=39 // pred_region
          %298 = dma.done %s291, 256
        $region44: #{tpu_custom_call.1} parent=39 // pred_fallthru
          _
        %s299 = sand.u32 %s26, 1
        %s300 = scalar_lea.sflag [#allocation6], %s299
        %s301 = sand.u32 %s80, 1
        %s302 = smul.addr %s301, 8
        %s303 = scalar_lea.vmem [#allocation5], %s302
        // Predicated region
        $region45: #{tpu_custom_call.1} parent=39 // pred_check
          %p304 = pneg %p93
        $region46: #{tpu_custom_call.1} parent=39 // pred_check_branch
          %306 = sbr.rel (%p304) target = $region48
        $region47: #{tpu_custom_call.1} parent=39 // pred_region
          %307 = dma.done %s300, 128
        $region48: #{tpu_custom_call.1} parent=39 // pred_fallthru
          _
        // Predicated region
        $region49: #{tpu_custom_call.1} parent=39 // pred_check
          %p308 = pneg %p114
        $region50: #{tpu_custom_call.1} parent=39 // pred_check_branch
          %310 = sbr.rel (%p308) target = $region52
        $region51: #{tpu_custom_call.1} parent=39 // pred_region
          %311 = dma.done [#allocation6], 768
        $region52: #{tpu_custom_call.1} parent=39 // pred_fallthru
          _
        // Predicated region
        $region53: #{tpu_custom_call.1} parent=39 // pred_check
          %p312 = pneg %p135
        $region54: #{tpu_custom_call.1} parent=39 // pred_check_branch
          %314 = sbr.rel (%p312) target = $region56
        $region55: #{tpu_custom_call.1} parent=39 // pred_region
          %315 = dma.done [#allocation9], 768
        $region56: #{tpu_custom_call.1} parent=39 // pred_fallthru
          _
        %s316 = sand.u32 %s48, 1
        %s317 = scalar_lea.sflag [#allocation3], %s316
        %s318 = sand.u32 %s48, 1
        %s319 = smul.addr %s318, 16
        %s320 = scalar_lea.vmem [#allocation2], %s319
        %p321 = pneg %p61
        %p322 = pneg %p58
        %s323 = sand.u32 %s26, 1
        %s324 = scalar_lea.sflag [#allocation6], %s323
        %s325 = sand.u32 %s80, 1
        %s326 = smul.addr %s325, 8
        %s327 = scalar_lea.vmem [#allocation5], %s326
        %p328 = pneg %p93
        %p329 = pneg %p90
        %p330 = pneg %p114
        %p331 = pneg %p111
        %p332 = pneg %p135
        %p333 = pneg %p132
        %p334 = pneg %p156
        %p335 = pneg %p153
        %p336 = pneg %p184
        %p337 = pneg %p181
        %s338 = sand.u32 %s171, 1
        %s339 = scalar_lea.sflag [#allocation4], %s338
        %s340 = sand.u32 %s171, 1
        %s341 = smul.addr %s340, 16
        %s342 = scalar_lea.vmem [#allocation10], %s341
        %s343 = smul.u32 2, %s31
        %s344 = ssub.s32 3, %s343
        %p345 = scmp.lt.s32.totalorder %s344, 2
        %s346 = scalar_select %p345, %s344, 2
        %s347 = smul.u32 128, %s346
        %s348 = sadd.s32 %s31, 1
        %s349 = smul.u32 %s348, 2
        %s350 = smul.u32 2, %s31
        %v352 = vld [vmem:[%s294] sm:$0xff]
        %v353 = vld [vmem:[%s294 + $0x8] sm:$0xff]
        %v354 = vld [vmem:[%s303] sm:$0xff]
        %v355 = vpack.c.bf16 %v353, %v352
        %v356 = vld [vmem:[#allocation7] sm:$0xf]
        %v357 = vld [vmem:[#allocation7 + $0x4] sm:$0xf]
        %v358 = vld [vmem:[#allocation7 + $0x8] sm:$0xf]
        %v359 = vld [vmem:[#allocation7 + $0xc] sm:$0xf]
        %v360 = vld [vmem:[#allocation8] sm:$0xf]
        %v361 = vld [vmem:[#allocation8 + $0x4] sm:$0xf]
        %v362 = vld [vmem:[#allocation8 + $0x8] sm:$0xf]
        %v363 = vld [vmem:[#allocation8 + $0xc] sm:$0xf]
        %v364 = vpack.c.bf16 %v354, %v354
        %s365 = scalar_lea.vmem [#allocation7], 16
        %v366 = vld [vmem:[%s365] sm:$0xf]
        %v367 = vld [vmem:[%s365 + $0x4] sm:$0xf]
        %v368 = vld [vmem:[%s365 + $0x8] sm:$0xf]
        %v369 = vld [vmem:[%s365 + $0xc] sm:$0xf]
        %vm372 = vcmask 1046528
        %v373 = vrot.slane %v355, 1
        %v374 = vrot.slane %v364, 1
        %v375 = vsel %vm372, %v373, %v374
        %v380 = vunpack.c.l.b16 %v366
        %v381 = vunpack.c.l.b16 %v367
        %v382 = vunpack.c.l.b16 %v368
        %v383 = vunpack.c.l.b16 %v369
        %v384 = vpack.c.b16 %v381, %v380
        %v385 = vpack.c.b16 %v383, %v382
        %vm388 = vcmask 261120
        %v390 = vsel %vm388, %v375, 0
        %392 = vmatprep.subr.bf16.mxu0 0
        %393 = vmatpush1.bf16.msra.mxu0 0
        %394 = vmatprep.subr.bf16.mxu0 0
        %395 = vmatpush1.bf16.msra.mxu0 0
        %396 = vmatprep.subr.bf16.mxu0 0
        %397 = vmatpush1.bf16.msra.mxu0 0
        %398 = vmatprep.subr.bf16.mxu0 0
        %399 = vmatpush1.bf16.msra.mxu0 0
        %400 = vmatprep.subr.bf16.mxu0 0
        %401 = vmatpush1.bf16.msra.mxu0 0
        %402 = vmatprep.subr.bf16.mxu0 0
        %403 = vmatpush1.bf16.msra.mxu0 0
        %404 = vmatprep.subr.bf16.mxu0 0
        %405 = vmatpush1.bf16.msra.mxu0 %v385
        %406 = vmatprep.subr.bf16.mxu0 0
        %407 = vmatpush1.bf16.msra.mxu0 %v384
        %408 = vmatprep.subr.bf16.mxu0 0
        %409 = vmatpush2.bf16.msra.mxu0 0
        %410 = vmatprep.subr.bf16.mxu0 0
        %411 = vmatpush2.bf16.msra.mxu0 0
        %412 = vmatprep.subr.bf16.mxu0 0
        %413 = vmatpush2.bf16.msra.mxu0 0
        %414 = vmatprep.subr.bf16.mxu0 0
        %415 = vmatpush2.bf16.msra.mxu0 0
        %416 = vmatprep.subr.bf16.mxu0 0
        %417 = vmatpush2.bf16.msra.mxu0 0
        %418 = vmatprep.subr.bf16.mxu0 0
        %419 = vmatpush2.bf16.msra.mxu0 0
        %420 = vmatprep.subr.bf16.mxu0 0
        %421 = vmatpush2.bf16.msra.mxu0 0
        %422 = vmatprep.subr.bf16.mxu0 0
        %423 = vmatpush2.bf16.msra.mxu0 0
        %424 = vmatprep.mubr.bf16.mxu0 0
        %425 = vmatmul.mubr.bf16.gmra.mxu0 %v390
        %v426 = vpop.f32.mrf.mxu0
        %v427 = vadd.f32 0.0, %v426
        %v428 = vpop.f32.mrf.mxu0
        %v429 = vpop.f32.mrf.mxu0
        %v430 = vadd.f32 0.0, %v429
        %v431 = vpop.f32.mrf.mxu0
        %432 = vdwg.mxu0
        %v437 = vunpack.c.l.b16 %v356
        %v438 = vunpack.c.l.b16 %v357
        %v439 = vunpack.c.l.b16 %v358
        %v440 = vunpack.c.l.b16 %v359
        %v441 = vpack.c.b16 %v438, %v437
        %v442 = vpack.c.b16 %v440, %v439
        %v446 = vsel %vm388, %v355, 0
        %448 = vmatprep.subr.bf16.mxu0 0
        %449 = vmatpush1.bf16.msra.mxu0 0
        %450 = vmatprep.subr.bf16.mxu0 0
        %451 = vmatpush1.bf16.msra.mxu0 0
        %452 = vmatprep.subr.bf16.mxu0 0
        %453 = vmatpush1.bf16.msra.mxu0 0
        %454 = vmatprep.subr.bf16.mxu0 0
        %455 = vmatpush1.bf16.msra.mxu0 0
        %456 = vmatprep.subr.bf16.mxu0 0
        %457 = vmatpush1.bf16.msra.mxu0 0
        %458 = vmatprep.subr.bf16.mxu0 0
        %459 = vmatpush1.bf16.msra.mxu0 0
        %460 = vmatprep.subr.bf16.mxu0 0
        %461 = vmatpush1.bf16.msra.mxu0 %v442
        %462 = vmatprep.subr.bf16.mxu0 0
        %463 = vmatpush1.bf16.msra.mxu0 %v441
        %464 = vmatprep.subr.bf16.mxu0 0
        %465 = vmatpush2.bf16.msra.mxu0 0
        %466 = vmatprep.subr.bf16.mxu0 0
        %467 = vmatpush2.bf16.msra.mxu0 0
        %468 = vmatprep.subr.bf16.mxu0 0
        %469 = vmatpush2.bf16.msra.mxu0 0
        %470 = vmatprep.subr.bf16.mxu0 0
        %471 = vmatpush2.bf16.msra.mxu0 0
        %472 = vmatprep.subr.bf16.mxu0 0
        %473 = vmatpush2.bf16.msra.mxu0 0
        %474 = vmatprep.subr.bf16.mxu0 0
        %475 = vmatpush2.bf16.msra.mxu0 0
        %476 = vmatprep.subr.bf16.mxu0 0
        %477 = vmatpush2.bf16.msra.mxu0 0
        %478 = vmatprep.subr.bf16.mxu0 0
        %479 = vmatpush2.bf16.msra.mxu0 0
        %480 = vmatprep.mubr.bf16.mxu0 0
        %481 = vmatmul.mubr.bf16.gmra.mxu0 %v446
        %v482 = vpop.f32.mrf.mxu0
        %v483 = vadd.f32 %v427, %v482
        %v484 = vpop.f32.mrf.mxu0
        %v485 = vpop.f32.mrf.mxu0
        %v486 = vadd.f32 %v430, %v485
        %v487 = vpop.f32.mrf.mxu0
        %488 = vdwg.mxu0
        %s489 = scalar_lea.vmem [#allocation8], 16
        %v490 = vld [vmem:[%s489] sm:$0xf]
        %v491 = vld [vmem:[%s489 + $0x4] sm:$0xf]
        %v492 = vld [vmem:[%s489 + $0x8] sm:$0xf]
        %v493 = vld [vmem:[%s489 + $0xc] sm:$0xf]
        %v498 = vunpack.c.l.b16 %v490
        %v499 = vunpack.c.l.b16 %v491
        %v500 = vunpack.c.l.b16 %v492
        %v501 = vunpack.c.l.b16 %v493
        %v502 = vpack.c.b16 %v499, %v498
        %v503 = vpack.c.b16 %v501, %v500
        %506 = vmatprep.subr.bf16.mxu0 0
        %507 = vmatpush1.bf16.msra.mxu0 0
        %508 = vmatprep.subr.bf16.mxu0 0
        %509 = vmatpush1.bf16.msra.mxu0 0
        %510 = vmatprep.subr.bf16.mxu0 0
        %511 = vmatpush1.bf16.msra.mxu0 0
        %512 = vmatprep.subr.bf16.mxu0 0
        %513 = vmatpush1.bf16.msra.mxu0 0
        %514 = vmatprep.subr.bf16.mxu0 0
        %515 = vmatpush1.bf16.msra.mxu0 0
        %516 = vmatprep.subr.bf16.mxu0 0
        %517 = vmatpush1.bf16.msra.mxu0 0
        %518 = vmatprep.subr.bf16.mxu0 0
        %519 = vmatpush1.bf16.msra.mxu0 %v503
        %520 = vmatprep.subr.bf16.mxu0 0
        %521 = vmatpush1.bf16.msra.mxu0 %v502
        %522 = vmatprep.subr.bf16.mxu0 0
        %523 = vmatpush2.bf16.msra.mxu0 0
        %524 = vmatprep.subr.bf16.mxu0 0
        %525 = vmatpush2.bf16.msra.mxu0 0
        %526 = vmatprep.subr.bf16.mxu0 0
        %527 = vmatpush2.bf16.msra.mxu0 0
        %528 = vmatprep.subr.bf16.mxu0 0
        %529 = vmatpush2.bf16.msra.mxu0 0
        %530 = vmatprep.subr.bf16.mxu0 0
        %531 = vmatpush2.bf16.msra.mxu0 0
        %532 = vmatprep.subr.bf16.mxu0 0
        %533 = vmatpush2.bf16.msra.mxu0 0
        %534 = vmatprep.subr.bf16.mxu0 0
        %535 = vmatpush2.bf16.msra.mxu0 0
        %536 = vmatprep.subr.bf16.mxu0 0
        %537 = vmatpush2.bf16.msra.mxu0 0
        %538 = vmatprep.mubr.bf16.mxu0 0
        %539 = vmatmul.mubr.bf16.gmra.mxu0 %v390
        %v540 = vpop.f32.mrf.mxu0
        %v541 = vadd.f32 0.0, %v540
        %v542 = vpop.f32.mrf.mxu0
        %v543 = vpop.f32.mrf.mxu0
        %v544 = vadd.f32 0.0, %v543
        %v545 = vpop.f32.mrf.mxu0
        %546 = vdwg.mxu0
        %v551 = vunpack.c.l.b16 %v360
        %v552 = vunpack.c.l.b16 %v361
        %v553 = vunpack.c.l.b16 %v362
        %v554 = vunpack.c.l.b16 %v363
        %v555 = vpack.c.b16 %v552, %v551
        %v556 = vpack.c.b16 %v554, %v553
        %559 = vmatprep.subr.bf16.mxu0 0
        %560 = vmatpush1.bf16.msra.mxu0 0
        %561 = vmatprep.subr.bf16.mxu0 0
        %562 = vmatpush1.bf16.msra.mxu0 0
        %563 = vmatprep.subr.bf16.mxu0 0
        %564 = vmatpush1.bf16.msra.mxu0 0
        %565 = vmatprep.subr.bf16.mxu0 0
        %566 = vmatpush1.bf16.msra.mxu0 0
        %567 = vmatprep.subr.bf16.mxu0 0
        %568 = vmatpush1.bf16.msra.mxu0 0
        %569 = vmatprep.subr.bf16.mxu0 0
        %570 = vmatpush1.bf16.msra.mxu0 0
        %571 = vmatprep.subr.bf16.mxu0 0
        %572 = vmatpush1.bf16.msra.mxu0 %v556
        %573 = vmatprep.subr.bf16.mxu0 0
        %574 = vmatpush1.bf16.msra.mxu0 %v555
        %575 = vmatprep.subr.bf16.mxu0 0
        %576 = vmatpush2.bf16.msra.mxu0 0
        %577 = vmatprep.subr.bf16.mxu0 0
        %578 = vmatpush2.bf16.msra.mxu0 0
        %579 = vmatprep.subr.bf16.mxu0 0
        %580 = vmatpush2.bf16.msra.mxu0 0
        %581 = vmatprep.subr.bf16.mxu0 0
        %582 = vmatpush2.bf16.msra.mxu0 0
        %583 = vmatprep.subr.bf16.mxu0 0
        %584 = vmatpush2.bf16.msra.mxu0 0
        %585 = vmatprep.subr.bf16.mxu0 0
        %586 = vmatpush2.bf16.msra.mxu0 0
        %587 = vmatprep.subr.bf16.mxu0 0
        %588 = vmatpush2.bf16.msra.mxu0 0
        %589 = vmatprep.subr.bf16.mxu0 0
        %590 = vmatpush2.bf16.msra.mxu0 0
        %591 = vmatprep.mubr.bf16.mxu0 0
        %592 = vmatmul.mubr.bf16.gmra.mxu0 %v446
        %v593 = vpop.f32.mrf.mxu0
        %v594 = vadd.f32 %v541, %v593
        %v595 = vpop.f32.mrf.mxu0
        %v596 = vpop.f32.mrf.mxu0
        %v597 = vadd.f32 %v544, %v596
        %v598 = vpop.f32.mrf.mxu0
        %599 = vdwg.mxu0
        %s600 = scalar_lea.vmem [#allocation7], 32
        %v601 = vld [vmem:[%s600] sm:$0xf]
        %v602 = vld [vmem:[%s600 + $0x4] sm:$0xf]
        %v603 = vld [vmem:[%s600 + $0x8] sm:$0xf]
        %v604 = vld [vmem:[%s600 + $0xc] sm:$0xf]
        %vm605 = vcmask 1045504
        %v606 = vrot.slane %v355, 2
        %v607 = vrot.slane %v364, 2
        %v608 = vsel %vm605, %v606, %v607
        %v613 = vunpack.c.l.b16 %v601
        %v614 = vunpack.c.l.b16 %v602
        %v615 = vunpack.c.l.b16 %v603
        %v616 = vunpack.c.l.b16 %v604
        %v617 = vpack.c.b16 %v614, %v613
        %v618 = vpack.c.b16 %v616, %v615
        %v622 = vsel %vm388, %v608, 0
        %624 = vmatprep.subr.bf16.mxu0 0
        %625 = vmatpush1.bf16.msra.mxu0 0
        %626 = vmatprep.subr.bf16.mxu0 0
        %627 = vmatpush1.bf16.msra.mxu0 0
        %628 = vmatprep.subr.bf16.mxu0 0
        %629 = vmatpush1.bf16.msra.mxu0 0
        %630 = vmatprep.subr.bf16.mxu0 0
        %631 = vmatpush1.bf16.msra.mxu0 0
        %632 = vmatprep.subr.bf16.mxu0 0
        %633 = vmatpush1.bf16.msra.mxu0 0
        %634 = vmatprep.subr.bf16.mxu0 0
        %635 = vmatpush1.bf16.msra.mxu0 0
        %636 = vmatprep.subr.bf16.mxu0 0
        %637 = vmatpush1.bf16.msra.mxu0 %v618
        %638 = vmatprep.subr.bf16.mxu0 0
        %639 = vmatpush1.bf16.msra.mxu0 %v617
        %640 = vmatprep.subr.bf16.mxu0 0
        %641 = vmatpush2.bf16.msra.mxu0 0
        %642 = vmatprep.subr.bf16.mxu0 0
        %643 = vmatpush2.bf16.msra.mxu0 0
        %644 = vmatprep.subr.bf16.mxu0 0
        %645 = vmatpush2.bf16.msra.mxu0 0
        %646 = vmatprep.subr.bf16.mxu0 0
        %647 = vmatpush2.bf16.msra.mxu0 0
        %648 = vmatprep.subr.bf16.mxu0 0
        %649 = vmatpush2.bf16.msra.mxu0 0
        %650 = vmatprep.subr.bf16.mxu0 0
        %651 = vmatpush2.bf16.msra.mxu0 0
        %652 = vmatprep.subr.bf16.mxu0 0
        %653 = vmatpush2.bf16.msra.mxu0 0
        %654 = vmatprep.subr.bf16.mxu0 0
        %655 = vmatpush2.bf16.msra.mxu0 0
        %656 = vmatprep.mubr.bf16.mxu0 0
        %657 = vmatmul.mubr.bf16.gmra.mxu0 %v622
        %v658 = vpop.f32.mrf.mxu0
        %v659 = vadd.f32 0.0, %v658
        %v660 = vpop.f32.mrf.mxu0
        %v661 = vpop.f32.mrf.mxu0
        %v662 = vadd.f32 0.0, %v661
        %v663 = vpop.f32.mrf.mxu0
        %664 = vdwg.mxu0
        %v665 = vadd.f32 %v483, %v659
        %v666 = vadd.f32 %v486, %v662
        %s667 = scalar_lea.vmem [#allocation8], 32
        %v668 = vld [vmem:[%s667] sm:$0xf]
        %v669 = vld [vmem:[%s667 + $0x4] sm:$0xf]
        %v670 = vld [vmem:[%s667 + $0x8] sm:$0xf]
        %v671 = vld [vmem:[%s667 + $0xc] sm:$0xf]
        %v676 = vunpack.c.l.b16 %v668
        %v677 = vunpack.c.l.b16 %v669
        %v678 = vunpack.c.l.b16 %v670
        %v679 = vunpack.c.l.b16 %v671
        %v680 = vpack.c.b16 %v677, %v676
        %v681 = vpack.c.b16 %v679, %v678
        %684 = vmatprep.subr.bf16.mxu0 0
        %685 = vmatpush1.bf16.msra.mxu0 0
        %686 = vmatprep.subr.bf16.mxu0 0
        %687 = vmatpush1.bf16.msra.mxu0 0
        %688 = vmatprep.subr.bf16.mxu0 0
        %689 = vmatpush1.bf16.msra.mxu0 0
        %690 = vmatprep.subr.bf16.mxu0 0
        %691 = vmatpush1.bf16.msra.mxu0 0
        %692 = vmatprep.subr.bf16.mxu0 0
        %693 = vmatpush1.bf16.msra.mxu0 0
        %694 = vmatprep.subr.bf16.mxu0 0
        %695 = vmatpush1.bf16.msra.mxu0 0
        %696 = vmatprep.subr.bf16.mxu0 0
        %697 = vmatpush1.bf16.msra.mxu0 %v681
        %698 = vmatprep.subr.bf16.mxu0 0
        %699 = vmatpush1.bf16.msra.mxu0 %v680
        %700 = vmatprep.subr.bf16.mxu0 0
        %701 = vmatpush2.bf16.msra.mxu0 0
        %702 = vmatprep.subr.bf16.mxu0 0
        %703 = vmatpush2.bf16.msra.mxu0 0
        %704 = vmatprep.subr.bf16.mxu0 0
        %705 = vmatpush2.bf16.msra.mxu0 0
        %706 = vmatprep.subr.bf16.mxu0 0
        %707 = vmatpush2.bf16.msra.mxu0 0
        %708 = vmatprep.subr.bf16.mxu0 0
        %709 = vmatpush2.bf16.msra.mxu0 0
        %710 = vmatprep.subr.bf16.mxu0 0
        %711 = vmatpush2.bf16.msra.mxu0 0
        %712 = vmatprep.subr.bf16.mxu0 0
        %713 = vmatpush2.bf16.msra.mxu0 0
        %714 = vmatprep.subr.bf16.mxu0 0
        %715 = vmatpush2.bf16.msra.mxu0 0
        %716 = vmatprep.mubr.bf16.mxu0 0
        %717 = vmatmul.mubr.bf16.gmra.mxu0 %v622
        %v718 = vpop.f32.mrf.mxu0
        %v719 = vadd.f32 0.0, %v718
        %v720 = vpop.f32.mrf.mxu0
        %v721 = vpop.f32.mrf.mxu0
        %v722 = vadd.f32 0.0, %v721
        %v723 = vpop.f32.mrf.mxu0
        %724 = vdwg.mxu0
        %v725 = vadd.f32 %v594, %v719
        %v726 = vadd.f32 %v597, %v722
        %v727 = vld [vmem:[%s4] sm:$0x1]
        %v728 = vlaneseq
        %v729 = vshrl.u32 %v728, 7
        %v730 = vsub.s32 0, %v729
        %v731 = vrot.slane %v727, %v730
        %v732 = vadd.f32 %v665, %v731
        %v733 = vadd.f32 %v666, %v731
        %v734 = vld [vmem:[%s4 + $0x1] sm:$0x1]
        %v735 = vlaneseq
        %v736 = vshrl.u32 %v735, 7
        %v737 = vsub.s32 0, %v736
        %v738 = vrot.slane %v734, %v737
        %v739 = vadd.f32 %v725, %v738
        %v740 = vadd.f32 %v726, %v738
        %v741 = vxor.u32 %v739, 2147483648
        %v742 = vxor.u32 %v740, 2147483648
        %v743 = vmul.f32 %v741, 1.442695
        %v744 = vpow.pop %v743
        %v745 = vmul.f32 %v742, 1.442695
        %v746 = vpow.pop %v745
        %v747 = vadd.f32 %v744, 1.0
        %v748 = vadd.f32 %v746, 1.0
        %v749 = vrcp.pop %v747
        %v750 = vmul.f32 1.0, %v749
        %v751 = vrcp.pop %v748
        %v752 = vmul.f32 1.0, %v751
        %v753 = vmul.f32 %v732, %v750
        %v754 = vmul.f32 %v733, %v752
        %vm757 = vcmask 1041408
        %v758 = vrot.slane %v753, 6
        %v759 = vrot.slane %v754, 6
        %v760 = vsel %vm757, %v758, %v759
        %v764 = vadd.f32 %v352, %v758
        %v765 = vadd.f32 %v353, %v760
        %v766 = vadd.f32 %v354, %v759
        %vm767 = vcmask 261122
        %768 = vst.msk [vmem:[%s342 - $0x2] sm:$0xfc] %vm767, %v764
        %769 = vst.msk [vmem:[%s342 + $0x6] sm:$0xff] %vm388, %v765
        %vm770 = vcmask 254976
        %771 = vst.msk [vmem:[%s342 + $0xe] sm:$0x3] %vm770, %v766
        %s772 = sand.u32 %s171, 1
        %s773 = scalar_lea.sflag [#allocation4], %s772
        %s774 = sand.u32 %s171, 1
        %s775 = smul.addr %s774, 16
        %s776 = scalar_lea.vmem [#allocation10], %s775
        // Predicated region
        $region57: #{tpu_custom_call.1} parent=39 // pred_check
          %p777 = pneg %p181
        $region58: #{tpu_custom_call.1} parent=39 // pred_check_branch
          %779 = sbr.rel (%p777) target = $region60
        $region59: #{tpu_custom_call.1} parent=39 // pred_region
          %s780 = smul.u32 2, %s31
          %s782 = ssub.s32 256, 256
          %783 = vsyncadd %s773, %s782
          %s784 = smul.addr %s30, 2
          %s785 = sadd.s32 %s780, %s784
          %s786 = smul.addr %s785, 128
          %s787 = scalar_lea.hbm %s5, %s786
          %s788 = sshll.u32 %s776, 4
          %s789 = int_to_ptr.vmem [resolvable:$true] %s788
          %794 = dma.vmem_to_hbm [thread:$0]  %s789, 256, %s787, %s773, 128, 128, 8
        $region60: #{tpu_custom_call.1} parent=39 // pred_fallthru
          _
      $region40: #{tpu_custom_call.1} parent=5 // pred_fallthru
        _
      %p795 = scmp.le.s32.totalorder 2, %s21
      // Predicated region
      $region61: #{tpu_custom_call.1} parent=5 // pred_check
        %p796 = pneg %p795
      $region62: #{tpu_custom_call.1} parent=5 // pred_check_branch
        %798 = sbr.rel (%p796) target = $region64
      $region63: #{tpu_custom_call.1} parent=5 // pred_region
        %s799 = ssub.s32 %s21, 2
        // Predicated region
        $region65: #{tpu_custom_call.1} parent=63 // pred_check
          %p800 = pneg %p187
        $region66: #{tpu_custom_call.1} parent=63 // pred_check_branch
          %802 = sbr.rel (%p800) target = $region68
        $region67: #{tpu_custom_call.1} parent=63 // pred_region
          %s803 = sand.u32 %s172, 1
          %s804 = scalar_lea.sflag [#allocation4], %s803
          %s805 = sand.u32 %s172, 1
          %s806 = smul.addr %s805, 16
          %s807 = scalar_lea.vmem [#allocation10], %s806
          %808 = dma.done %s804, 256
        $region68: #{tpu_custom_call.1} parent=63 // pred_fallthru
          _
      $region64: #{tpu_custom_call.1} parent=5 // pred_fallthru
        _
    $region6: #{tpu_custom_call.1} parent=1 // loop_footer
      %s25 = sadd.s32 1, %s21
    $region7: #{tpu_custom_call.1} parent=1 // loop_footer_branch
      %20 = sbr.rel target = $region3
    $region8: #{tpu_custom_call.1} parent=1 // loop_exit
      _
    %809 = vsyncpa [#allocation3], 1
    %s810 = scalar_lea.sflag [#allocation3], 1
    %811 = vsyncpa %s810, 1
    %812 = vsyncpa [#allocation6], 1
    %s813 = scalar_lea.sflag [#allocation6], 1
    %814 = vsyncpa %s813, 1
    %815 = vsyncpa [#allocation9], 1
    %816 = vsyncpa [#allocation4], 1
    %s817 = scalar_lea.sflag [#allocation4], 1
    %818 = vsyncpa %s817, 1

</llo_original>
